<compile_context>
chip_gen: v5e
topology: v5e:2x2
jax: 0.10.0
libtpu: 0.0.40
codegen_flags: <defaults>
</compile_context>

<pallas_src>
import jax
import jax.numpy as jnp
from jax import lax
from jax.experimental import pallas as pl
from jax.experimental.pallas import tpu as pltpu

_LANES = 128
_MIB = 1024 * 1024


def _cdiv(a, b):
    return -(-a // b)


def _round_up(a, m):
    return _cdiv(a, m) * m


def _device_info():
    """Generation-aware (vmem_budget, vmem_limit, tensorcores_per_device)."""
    kind = ""
    try:
        kind = jax.devices()[0].device_kind.lower()
    except Exception:
        pass
    is_v7 = ("v7" in kind) or ("tpu7" in kind)
    num_cores = 2 if is_v7 else 1            # v7x: 2 TensorCores per chip

    vmem_cap = None
    try:
        vmem_cap = int(pltpu.get_tpu_info().vmem_capacity_bytes)
    except Exception:
        if is_v7:
            vmem_cap = 64 * _MIB             # per-TensorCore on v7x
        elif any(k in kind for k in ("v5 lite", "v5e", "v5lite", "v6")):
            vmem_cap = 128 * _MIB            # v5e / v6e physical VMEM
    if not vmem_cap:
        # Unknown part: conservative limits known to fit everywhere.
        return 24 * _MIB, 32 * _MIB, num_cores

    vmem_limit = max(32 * _MIB, min(vmem_cap * 3 // 4, vmem_cap - 16 * _MIB))
    vmem_budget = vmem_limit * 3 // 4        # input-pipeline share of the limit
    return vmem_budget, vmem_limit, num_cores


def _plan_tiling(B, R, itemsize, vmem_budget, num_cores_avail,
                 max_rows_per_block=None):
    """Pick (num_cores, NJ, T): grid = (num_cores, NJ), blocks of T rows of
    128 lanes, with num_cores * NJ == cdiv(R, T) (no fully-OOB block)."""
    # Native packed sublane count: 8 for f32, 16 for bf16, 32 for int8/fp8.
    sublane = 8 * max(1, 4 // itemsize)
    # VMEM held by the input pipeline per spatial row: 2 inputs x 2 buffers.
    per_row = 4 * B * _LANES * itemsize
    t_max = max(sublane, (vmem_budget // per_row) // sublane * sublane)
    if max_rows_per_block is not None:
        t_max = min(t_max, max(sublane, _round_up(max_rows_per_block, sublane)))

    # One block covers everything (T == R is always a legal "full extent"
    # block even when R is not a multiple of the packed sublane count).
    if R <= t_max and (num_cores_avail == 1 or R < 2 * sublane):
        return 1, 1, R

    if num_cores_avail == 1:
        T = min(t_max, _round_up(R, sublane))
        return 1, _cdiv(R, T), T

    # Multi-TensorCore chip (v7x): pick an even block count so the leading
    # "parallel" axis splits across both cores and every block overlaps [0, R).
    T0 = min(t_max, _round_up(_cdiv(R, 2), sublane))
    nb0 = _cdiv(R, T0)
    start = nb0 if nb0 % 2 == 0 else nb0 + 1
    for nb in range(start, start + 10, 2):
        t = min(t_max, _round_up(_cdiv(R, nb), sublane))
        if _cdiv(R, t) == nb:
            return 2, nb // 2, t
    T = min(t_max, _round_up(R, sublane))
    return 1, _cdiv(R, T), T


def _make_align_kernel(nj, block_rows, valid_rows, needs_mask):
    """Accumulate per-batch, per-lane partial sums of min(cam, cam_co)."""

    def kernel(cam_ref, cam_co_ref, out_ref):
        j = pl.program_id(1)                 # reduction axis (last grid axis)

        @pl.when(j == 0)
        def _init():
            out_ref[...] = jnp.zeros_like(out_ref)

        m = jnp.minimum(cam_ref[...], cam_co_ref[...]).astype(jnp.float32)
        if needs_mask:
            # Mask rows past the real spatial extent (partial last block reads
            # undefined out-of-range data). Static flag -> no cost when unused.
            base = (pl.program_id(0) * nj + j) * block_rows
            rows = base + lax.broadcasted_iota(jnp.int32, m.shape, 2)
            m = jnp.where(rows < valid_rows, m, 0.0)

        # (B, 1, T, 128) -> (B, 1, 128): mostly VALU vreg adds plus one small
        # intra-vreg sublane reduce (XLU slot, free in this mem-bound loop).
        out_ref[...] += jnp.sum(m, axis=2)

    return kernel


def align_loss(cam, cam_co, label, reduction='elementwise_mean',
               max_rows_per_block=None):
    """Pallas TPU implementation of AlignLoss.forward (scalar reductions).

    Accumulation is done in float32 (slightly more accurate than a bit-exact
    low-precision reduction for bf16 inputs).
    """
    B, C, H, W = cam.shape
    assert cam_co.shape == cam.shape
    HW = H * W
    if reduction not in ('elementwise_mean', 'sum'):
        # TODO(synk): reduction='none' (unreduced (B, H*W) loss map) is not
        # wired through this scalar-reduction kernel.
        raise NotImplementedError(reduction)

    itemsize = jnp.dtype(cam.dtype).itemsize
    vmem_budget, vmem_limit, cores_avail = _device_info()
    R = _cdiv(HW, _LANES)                    # spatial rows of 128 lanes

    if HW % _LANES == 0:
        # Free reshape; channel 1 is picked by the BlockSpec -> no HBM copy.
        cam_in = cam.reshape(B, C, R, _LANES)
        cam_co_in = cam_co.reshape(B, C, R, _LANES)
        ch = 1
    else:
        # Non-lane-aligned spatial size: slice channel 1 and zero-pad just
        # that slab (padded lanes contribute min(0, 0) == 0 to the sum).
        # TODO(synk): avoid this HBM copy with an element-offset tail mask.
        pad = ((0, 0), (0, 0), (0, R * _LANES - HW))
        cam_in = jnp.pad(cam.reshape(B, C, HW)[:, 1:2, :], pad)
        cam_in = cam_in.reshape(B, 1, R, _LANES)
        cam_co_in = jnp.pad(cam_co.reshape(B, C, HW)[:, 1:2, :], pad)
        cam_co_in = cam_co_in.reshape(B, 1, R, _LANES)
        ch = 0

    num_cores, NJ, T = _plan_tiling(B, R, itemsize, vmem_budget, cores_avail,
                                    max_rows_per_block)
    needs_mask = num_cores * NJ * T > R

    spatial_spec = pl.BlockSpec((B, 1, T, _LANES),
                                lambda p, j: (0, ch, p * NJ + j, 0))

    partials = pl.pallas_call(
        _make_align_kernel(NJ, T, R, needs_mask),
        out_shape=jax.ShapeDtypeStruct((num_cores * B, 1, _LANES), jnp.float32),
        grid_spec=pltpu.PrefetchScalarGridSpec(
            num_scalar_prefetch=0,
            grid=(num_cores, NJ),
            in_specs=[spatial_spec, spatial_spec],
            out_specs=pl.BlockSpec((B, 1, _LANES), lambda p, j: (p, 0, 0)),
        ),
        compiler_params=pltpu.CompilerParams(
            # TODO(synk): on v7x, confirm the leading axis really shards over
            # both TensorCores; if one core idles, switch to pltpu.CORE_PARALLEL.
            dimension_semantics=("parallel", "arbitrary"),
            vmem_limit_bytes=vmem_limit,
        ),
        cost_estimate=pl.CostEstimate(
            flops=3 * B * HW,
            transcendentals=0,
            bytes_accessed=2 * B * HW * itemsize + num_cores * B * _LANES * 4,
        ),
    )(cam_in, cam_co_in)

    # Tiny final reduction + label dot in plain XLA (once, outside the kernel).
    per_batch = jnp.sum(partials.reshape(num_cores, B, _LANES), axis=(0, 2))
    total = jnp.sum(per_batch * label.reshape(-1).astype(jnp.float32))
    if reduction == 'elementwise_mean':
        return -total / (B * HW)
    return -total


def _align_loss_ref(cam, cam_co, label, reduction='elementwise_mean'):
    B = cam.shape[0]
    c = cam[:, 1, :, :].reshape(B, -1)
    cc = cam_co[:, 1, :, :].reshape(B, -1)
    lbl = label.reshape(-1, 1).astype(c.dtype)
    loss = -lbl * jnp.minimum(c, cc)
    return jnp.mean(loss) if reduction == 'elementwise_mean' else jnp.sum(loss)


if __name__ == "__main__":
    key = jax.random.PRNGKey(0)
    k1, k2 = jax.random.split(key, 2)

    # Case 1: lane-aligned spatial (16*16 = 2 rows of 128), single-block path.
    B, C, H, W = 2, 4, 16, 16
    cam = jax.random.normal(k1, (B, C, H, W), dtype=jnp.float32)
    cam_co = jax.random.normal(k2, (B, C, H, W), dtype=jnp.float32)
    label = jnp.array([1.0, 0.5], dtype=jnp.float32)

    out_mean = align_loss(cam, cam_co, label, 'elementwise_mean')
    out_sum = align_loss(cam, cam_co, label, 'sum')
    jax.block_until_ready((out_mean, out_sum))
    ref_mean = _align_loss_ref(cam, cam_co, label, 'elementwise_mean')
    ref_sum = _align_loss_ref(cam, cam_co, label, 'sum')
    assert jnp.allclose(out_mean, ref_mean, rtol=1e-5, atol=1e-5), (out_mean, ref_mean)
    assert jnp.allclose(out_sum, ref_sum, rtol=1e-5, atol=1e-4), (out_sum, ref_sum)

    # Case 2: multi-block reduction with a masked partial tail
    # (48*48 = 18 rows, capped to 8 rows/block -> 3 blocks, last one partial).
    H2 = W2 = 48
    c2 = jax.random.normal(k1, (B, C, H2, W2), dtype=jnp.float32)
    cc2 = jax.random.normal(k2, (B, C, H2, W2), dtype=jnp.float32)
    out2 = align_loss(c2, cc2, label, 'elementwise_mean', max_rows_per_block=8)
    jax.block_until_ready(out2)
    ref2 = _align_loss_ref(c2, cc2, label, 'elementwise_mean')
    assert jnp.allclose(out2, ref2, rtol=1e-5, atol=1e-5), (out2, ref2)

    # Case 3: non-lane-aligned spatial (10*10) -> padded channel-slab fallback.
    H3 = W3 = 10
    c3 = jax.random.normal(k1, (B, C, H3, W3), dtype=jnp.float32)
    cc3 = jax.random.normal(k2, (B, C, H3, W3), dtype=jnp.float32)
    out3 = align_loss(c3, cc3, label, 'sum')
    jax.block_until_ready(out3)
    ref3 = _align_loss_ref(c3, cc3, label, 'sum')
    assert jnp.allclose(out3, ref3, rtol=1e-5, atol=1e-4), (out3, ref3)

    print("KERNEL_OK")
</pallas_src>

<mosaic_0001>
module attributes {stable_mosaic.version = 11 : i64} {
  func.func @kernel(%arg0: i32, %arg1: i32, %arg2: memref<2x1x2x128xf32, #tpu.memory_space<vmem>>, %arg3: memref<2x1x2x128xf32, #tpu.memory_space<vmem>>, %arg4: memref<2x1x128xf32, #tpu.memory_space<vmem>>) attributes {dimension_semantics = [#tpu.dimension_semantics<parallel>, #tpu.dimension_semantics<arbitrary>], iteration_bounds = array<i64: 1, 1>, scalar_prefetch = 0 : i64, scratch_operands = 0 : i64, tpu.core_type = #tpu.core_type<tc>, window_params = [{transform_indices = @transform_0, window_bounds = array<i64: 2, 1, 2, 128>}, {transform_indices = @transform_1, window_bounds = array<i64: 2, 1, 2, 128>}, {transform_indices = @transform_2, window_bounds = array<i64: 2, 1, 128>}]} {
    %c0_i32 = arith.constant 0 : i32
    %0 = arith.cmpi eq, %arg1, %c0_i32 : i32
    %1 = arith.extui %0 : i1 to i32
    %c0_i32_0 = arith.constant 0 : i32
    %2 = arith.cmpi ne, %1, %c0_i32_0 : i32
    scf.if %2 {
      %cst_14 = arith.constant 0.000000e+00 : f32
      %10 = vector.broadcast %cst_14 : f32 to vector<2x1x128xf32>
      %c0_15 = arith.constant 0 : index
      %c0_16 = arith.constant 0 : index
      %c0_17 = arith.constant 0 : index
      %11 = vector.load %arg4[%c0_15, %c0_16, %c0_17] : memref<2x1x128xf32, #tpu.memory_space<vmem>>, vector<2x1x128xf32>
      tpu.vector_store %arg4[%c0_15, %c0_16, %c0_17], %10 {strides = array<i32>} : memref<2x1x128xf32, #tpu.memory_space<vmem>>, vector<2x1x128xf32>,
    } else {
    }
    %c0 = arith.constant 0 : index
    %c0_1 = arith.constant 0 : index
    %c0_2 = arith.constant 0 : index
    %c0_3 = arith.constant 0 : index
    %3 = vector.load %arg2[%c0, %c0_1, %c0_2, %c0_3] : memref<2x1x2x128xf32, #tpu.memory_space<vmem>>, vector<2x1x2x128xf32>
    %c0_4 = arith.constant 0 : index
    %c0_5 = arith.constant 0 : index
    %c0_6 = arith.constant 0 : index
    %c0_7 = arith.constant 0 : index
    %4 = vector.load %arg3[%c0_4, %c0_5, %c0_6, %c0_7] : memref<2x1x2x128xf32, #tpu.memory_space<vmem>>, vector<2x1x2x128xf32>
    %5 = arith.minimumf %3, %4 : vector<2x1x2x128xf32>
    %c0_8 = arith.constant 0 : index
    %c0_9 = arith.constant 0 : index
    %c0_10 = arith.constant 0 : index
    %6 = vector.load %arg4[%c0_8, %c0_9, %c0_10] : memref<2x1x128xf32, #tpu.memory_space<vmem>>, vector<2x1x128xf32>
    %cst = arith.constant dense<0.000000e+00> : vector<2x1x128xf32>
    %7 = vector.multi_reduction <add>, %5, %cst [2] : vector<2x1x2x128xf32> to vector<2x1x128xf32>
    %8 = arith.addf %6, %7 : vector<2x1x128xf32>
    %c0_11 = arith.constant 0 : index
    %c0_12 = arith.constant 0 : index
    %c0_13 = arith.constant 0 : index
    %9 = vector.load %arg4[%c0_11, %c0_12, %c0_13] : memref<2x1x128xf32, #tpu.memory_space<vmem>>, vector<2x1x128xf32>
    tpu.vector_store %arg4[%c0_11, %c0_12, %c0_13], %8 {strides = array<i32>} : memref<2x1x128xf32, #tpu.memory_space<vmem>>, vector<2x1x128xf32>,
    return
  }
  func.func @transform_0(%arg0: i32, %arg1: i32) -> (i32, i32, i32, i32) {
    %c1_i32 = arith.constant 1 : i32
    %0 = arith.muli %arg0, %c1_i32 : i32
    %1 = arith.addi %0, %arg1 : i32
    %c0_i32 = arith.constant 0 : i32
    %c1_i32_0 = arith.constant 1 : i32
    %c0_i32_1 = arith.constant 0 : i32
    %c0_i32_2 = arith.constant 0 : i32
    return %c0_i32, %c1_i32_0, %1, %c0_i32_1 : i32, i32, i32, i32
  }
  func.func @transform_1(%arg0: i32, %arg1: i32) -> (i32, i32, i32, i32) {
    %c1_i32 = arith.constant 1 : i32
    %0 = arith.muli %arg0, %c1_i32 : i32
    %1 = arith.addi %0, %arg1 : i32
    %c0_i32 = arith.constant 0 : i32
    %c1_i32_0 = arith.constant 1 : i32
    %c0_i32_1 = arith.constant 0 : i32
    %c0_i32_2 = arith.constant 0 : i32
    return %c0_i32, %c1_i32_0, %1, %c0_i32_1 : i32, i32, i32, i32
  }
  func.func @transform_2(%arg0: i32, %arg1: i32) -> (i32, i32, i32) {
    %c0_i32 = arith.constant 0 : i32
    %c0_i32_0 = arith.constant 0 : i32
    %c0_i32_1 = arith.constant 0 : i32
    return %arg0, %c0_i32, %c0_i32_0 : i32, i32, i32
  }
}

</mosaic_0001>

<llo_original>
// kernel: tpu_custom_call.1
$region0: #{tpu_custom_call.1}
  #allocation0 [shape = 'u32[]', space=smem, size = 0x4, offset = 0x4, fixed_abs, tag = 'smem constant byte address 0x4 - core index']
  #allocation1 [shape = 'u32[72,128]{1,0:T(1,128)}', space=vmem, size = 0x9000, scoped, tag = 'internal scratch']
  %s0 = inlined_call_operand.hbm [shape: f32[2,4,2,128], index: 0, kind: input, shape index: {}]
  %s1 = inlined_call_operand.hbm [shape: f32[2,4,2,128], index: 1, kind: input, shape index: {}]
  %s2 = inlined_call_operand.hbm [shape: f32[2,1,128], index: 2, kind: output, shape index: {}]
  %s3 = sld [smem:[#allocation0]]
  $region30: #{tpu_custom_call.1} parent=0
    _
  %s5 = ssub.s32 1, %s3
  %s6 = scalar_select 0, %s5, %s3
  $region1: #{tpu_custom_call.1} parent=0
    #allocation2 [shape = 'u8[2048]{0}', space=vmem, size = 0x800, scoped, tag = 'input window, operand 0, single buffered']
    #allocation3 [shape = 's32[1]{0}', space=sflag, size = 0x4, scoped, tag = 'scoped memory for tpu_custom_call.1']
    #allocation4 [shape = 's32[1]{0}', space=sflag, size = 0x4, scoped, tag = 'scoped memory for tpu_custom_call.1']
    #allocation5 [shape = 'u8[2048]{0}', space=vmem, size = 0x800, scoped, tag = 'input window, operand 1, single buffered']
    #allocation6 [shape = 's32[1]{0}', space=sflag, size = 0x4, scoped, tag = 'scoped memory for tpu_custom_call.1']
    #allocation7 [shape = 'u8[1024]{0}', space=vmem, size = 0x400, scoped, tag = 'output window, operand 0, single buffered']
    %7 = vsyncpa [#allocation3], 0
    %8 = vsyncpa [#allocation6], 0
    %9 = vsyncpa [#allocation4], 0
    // Predicated region
    $region2: #{tpu_custom_call.1} parent=1 // pred_check
      _
    $region3: #{tpu_custom_call.1} parent=1 // pred_check_branch
      %11 = sbr.rel (0) target = $region5
    $region4: #{tpu_custom_call.1} parent=1 // pred_region
      %s12 = sadd.s32 0, 0
      %14 = vsyncadd [#allocation3], 0
      %s15 = sadd.s32 %s12, 1
      %s16 = smul.addr %s15, 2
      %s17 = scalar_lea.hbm %s0, %s16
      %s18 = sshll.u32 %s17, 4
      %s19 = int_to_ptr.hbm [resolvable:$true] %s18
      %s20 = sshll.u32 [#allocation2], 4
      %s21 = int_to_ptr.vmem [resolvable:$true] %s20
      %26 = dma.hbm_to_vmem [thread:$0]  %s19, 64, %s21, [#allocation3], 128, 32, 2
    $region5: #{tpu_custom_call.1} parent=1 // pred_fallthru
      _
    // Predicated region
    $region6: #{tpu_custom_call.1} parent=1 // pred_check
      _
    $region7: #{tpu_custom_call.1} parent=1 // pred_check_branch
      %28 = sbr.rel (0) target = $region9
    $region8: #{tpu_custom_call.1} parent=1 // pred_region
      %s29 = sadd.s32 0, 0
      %31 = vsyncadd [#allocation6], 0
      %s32 = sadd.s32 %s29, 1
      %s33 = smul.addr %s32, 2
      %s34 = scalar_lea.hbm %s1, %s33
      %s35 = sshll.u32 %s34, 4
      %s36 = int_to_ptr.hbm [resolvable:$true] %s35
      %s37 = sshll.u32 [#allocation5], 4
      %s38 = int_to_ptr.vmem [resolvable:$true] %s37
      %43 = dma.hbm_to_vmem [thread:$0]  %s36, 64, %s38, [#allocation6], 128, 32, 2
    $region9: #{tpu_custom_call.1} parent=1 // pred_fallthru
      _
    // Predicated region
    $region10: #{tpu_custom_call.1} parent=1 // pred_check
      _
    $region11: #{tpu_custom_call.1} parent=1 // pred_check_branch
      %45 = sbr.rel (0) target = $region13
    $region12: #{tpu_custom_call.1} parent=1 // pred_region
      %47 = dma.done [#allocation3], 64
    $region13: #{tpu_custom_call.1} parent=1 // pred_fallthru
      _
    // Predicated region
    $region14: #{tpu_custom_call.1} parent=1 // pred_check
      _
    $region15: #{tpu_custom_call.1} parent=1 // pred_check_branch
      %49 = sbr.rel (0) target = $region17
    $region16: #{tpu_custom_call.1} parent=1 // pred_region
      %51 = dma.done [#allocation6], 64
    $region17: #{tpu_custom_call.1} parent=1 // pred_fallthru
      _
    %s52 = sadd.s32 0, 0
    %s53 = sadd.s32 0, 0
    %p54 = scmp.eq.s32.totalorder 0, 0
    // Predicated region
    $region18: #{tpu_custom_call.1} parent=1 // pred_check
      %p55 = pneg %p54
    $region19: #{tpu_custom_call.1} parent=1 // pred_check_branch
      %57 = sbr.rel (%p55) target = $region21
    $region20: #{tpu_custom_call.1} parent=1 // pred_region
      %58 = vst [vmem:[#allocation7] sm:$0x1] 0.0
      %59 = vst [vmem:[#allocation7 + $0x1] sm:$0x1] 0.0
    $region21: #{tpu_custom_call.1} parent=1 // pred_fallthru
      _
    %v60 = vld [vmem:[#allocation2] sm:$0x3]
    %v61 = vld [vmem:[#allocation2 + $0x2] sm:$0x3]
    %v62 = vld [vmem:[#allocation5] sm:$0x3]
    %v63 = vld [vmem:[#allocation5 + $0x2] sm:$0x3]
    %v64 = vmin.f32 %v60, %v62
    %v65 = vmin.f32 %v61, %v63
    %v66 = vld [vmem:[#allocation7] sm:$0x1]
    %v67 = vld [vmem:[#allocation7 + $0x1] sm:$0x1]
    %vm68 = vcmask 1041408
    %v69 = vsel %vm68, %v64, 0.0
    %v70 = vrot.slane %v69, 4
    %v71 = vadd.f32 %v69, %v70
    %v72 = vrot.slane %v71, 2
    %v73 = vadd.f32 %v71, %v72
    %v74 = vrot.slane %v73, 1
    %v75 = vadd.f32 %v73, %v74
    %v76 = vsel %vm68, %v65, 0.0
    %v77 = vrot.slane %v76, 4
    %v78 = vadd.f32 %v76, %v77
    %v79 = vrot.slane %v78, 2
    %v80 = vadd.f32 %v78, %v79
    %v81 = vrot.slane %v80, 1
    %v82 = vadd.f32 %v80, %v81
    %v83 = vadd.f32 %v66, %v75
    %v84 = vadd.f32 %v67, %v82
    %85 = vst [vmem:[#allocation7] sm:$0x1] %v83
    %86 = vst [vmem:[#allocation7 + $0x1] sm:$0x1] %v84
    // Predicated region
    $region22: #{tpu_custom_call.1} parent=1 // pred_check
      _
    $region23: #{tpu_custom_call.1} parent=1 // pred_check_branch
      %88 = sbr.rel (0) target = $region25
    $region24: #{tpu_custom_call.1} parent=1 // pred_region
      %90 = vsyncadd [#allocation4], 0
      %s91 = sshll.u32 [#allocation7], 4
      %s92 = int_to_ptr.vmem [resolvable:$true] %s91
      %s93 = sshll.u32 %s2, 4
      %s94 = int_to_ptr.hbm [resolvable:$true] %s93
      %99 = dma.vmem_to_hbm [thread:$0]  %s92, 32, %s94, [#allocation4], 16, 16, 1
    $region25: #{tpu_custom_call.1} parent=1 // pred_fallthru
      _
    // Predicated region
    $region26: #{tpu_custom_call.1} parent=1 // pred_check
      _
    $region27: #{tpu_custom_call.1} parent=1 // pred_check_branch
      %101 = sbr.rel (0) target = $region29
    $region28: #{tpu_custom_call.1} parent=1 // pred_region
      %103 = dma.done [#allocation4], 32
    $region29: #{tpu_custom_call.1} parent=1 // pred_fallthru
      _
    %104 = vsyncpa [#allocation3], 1
    %105 = vsyncpa [#allocation6], 1
    %106 = vsyncpa [#allocation4], 1

</llo_original>
